<compile_context>
chip_gen: v7x
topology: tpu7x:2x2x1
jax: 0.10.0
libtpu: 0.0.40
codegen_flags: <defaults>
</compile_context>

<pallas_src>
import jax
import jax.numpy as jnp
from jax.experimental import pallas as pl
from jax.experimental.pallas import tpu as pltpu


def _linear_kernel(params_ref, x_ref, o_ref):
    """params_ref: SMEM (4,) = [w0, w1, w2, b]; x_ref: (3, TB); o_ref: (1, TB)."""
    w0 = params_ref[0]
    w1 = params_ref[1]
    w2 = params_ref[2]
    b = params_ref[3]
    # 3 VPU multiply-adds + one scalar bias broadcast; batch stays lane-dense.
    acc = w0 * x_ref[0:1, :] + w1 * x_ref[1:2, :] + w2 * x_ref[2:3, :] + b
    o_ref[...] = acc.astype(o_ref.dtype)


def _round_up(n, m):
    return ((n + m - 1) // m) * m


def _choose_tile(batch, max_tile):
    # Clamp caller-provided cap to a multiple of 128 lanes (>= 128).
    cap = max(128, (max_tile // 128) * 128)
    # Never allocate a wider tile than one 128-rounded batch needs.
    tb = min(cap, _round_up(max(batch, 1), 128))
    # Guarantee >= 2 grid steps for mid/large batches so the "parallel" batch
    # axis shards across both TensorCores on v7x (neutral on v5e/v6e).
    if batch >= 256:
        tb = min(tb, max(128, _round_up(pl.cdiv(batch, 2), 128)))
    return tb


def multivariate_linear_regression(x, weight, bias, *, max_tile=65536,
                                   feature_major=False):
    """Forward pass of nn.Linear(3, 1).

    x: (B, 3) (PyTorch contract) or (3, B) if feature_major=True.
    weight: (1, 3) f32 (PyTorch layout); bias: (1,) f32.
    Returns (B, 1), matching nn.Linear(3, 1)(x).
    """
    if feature_major:
        f_in, batch = x.shape
    else:
        batch, f_in = x.shape
    assert f_in == 3, "MultivariateLinearRegressionModel expects 3 input features"

    # Layout plumbing: features -> sublanes, batch -> lanes.  Single transpose
    # copy on the default path; zero copies on the feature-major path.
    x_f32 = x.astype(jnp.float32)
    x_t = x_f32 if feature_major else x_f32.T                      # (3, B)

    tb = _choose_tile(batch, max_tile)
    n_blocks = pl.cdiv(batch, tb)       # partial last block: masked, no padding

    # Pack weight + bias as 4 scalars for SMEM.
    params = jnp.concatenate(
        [weight.reshape(-1), bias.reshape(-1)]
    ).astype(jnp.float32)                                          # (4,)

    out_t = pl.pallas_call(
        _linear_kernel,
        out_shape=jax.ShapeDtypeStruct((1, batch), jnp.float32),
        grid_spec=pl.GridSpec(
            grid=(n_blocks,),
            in_specs=[
                # Whole (4,) parameter vector in SMEM (no per-step VMEM tile).
                pl.BlockSpec(memory_space=pltpu.MemorySpace.SMEM),
                # Batch-tiled, lane-dense input: (3, TB) per grid step.
                pl.BlockSpec((f_in, tb), lambda i: (0, i)),
            ],
            out_specs=pl.BlockSpec((1, tb), lambda i: (0, i)),
        ),
        compiler_params=pltpu.CompilerParams(
            dimension_semantics=("parallel",),   # shard batch across TCs on v7x
            vmem_limit_bytes=32 * 1024 * 1024,   # >> 128*tb bytes actually used
        ),
        cost_estimate=pl.CostEstimate(
            flops=6 * batch, transcendentals=0, bytes_accessed=16 * batch),
    )(params, x_t)

    # (1, B) -> (B, 1) is a free bitcast (same linear layout); keeps the
    # PyTorch-matching contract without re-materializing the output.
    return out_t.reshape(batch, 1).astype(x.dtype)


if __name__ == "__main__":
    key = jax.random.PRNGKey(0)
    kx, kw, kb, kx2 = jax.random.split(key, 4)

    # Deterministic parameters (shapes from nn.Linear(3, 1)).
    weight = jax.random.normal(kw, (1, 3), dtype=jnp.float32) * 0.1
    bias = jax.random.normal(kb, (1,), dtype=jnp.float32) * 0.1

    # Small batch of 3-feature inputs (module contract: (B, 3) -> (B, 1)).
    x = jax.random.normal(kx, (8, 3), dtype=jnp.float32)
    out = jax.block_until_ready(multivariate_linear_regression(x, weight, bias))
    ref = x @ weight.T + bias
    assert out.shape == (8, 1)
    assert jnp.allclose(out, ref, atol=1e-5, rtol=1e-5)

    # Non-multiple-of-128 batch with a small tile cap: multiple grid steps plus
    # a masked partial last block (no padding anywhere).
    x2 = jax.random.normal(kx2, (260, 3), dtype=jnp.float32)
    out2 = jax.block_until_ready(
        multivariate_linear_regression(x2, weight, bias, max_tile=128))
    ref2 = x2 @ weight.T + bias
    assert out2.shape == (260, 1)
    assert jnp.allclose(out2, ref2, atol=1e-5, rtol=1e-5)

    # Feature-major fast path (skips the wrapper transpose entirely).
    out3 = jax.block_until_ready(
        multivariate_linear_regression(x2.T, weight, bias, feature_major=True))
    assert out3.shape == (260, 1)
    assert jnp.allclose(out3, ref2, atol=1e-5, rtol=1e-5)

    print("KERNEL_OK")
</pallas_src>

<mosaic_0001>
module attributes {stable_mosaic.version = 11 : i64} {
  func.func @_linear_kernel(%arg0: i32, %arg1: memref<4xf32, #tpu.memory_space<smem>>, %arg2: memref<3x128xf32, #tpu.memory_space<vmem>>, %arg3: memref<1x128xf32, #tpu.memory_space<vmem>>) attributes {dimension_semantics = [#tpu.dimension_semantics<parallel>], iteration_bounds = array<i64: 1>, scalar_prefetch = 0 : i64, scratch_operands = 0 : i64, tpu.core_type = #tpu.core_type<tc>, window_params = [{transform_indices = @transform_0, window_bounds = array<i64: 4>}, {transform_indices = @transform_1, window_bounds = array<i64: 3, 128>}, {transform_indices = @transform_2, window_bounds = array<i64: 1, 128>}]} {
    %c0 = arith.constant 0 : index
    %0 = memref.load %arg1[%c0] : memref<4xf32, #tpu.memory_space<smem>>
    %c1 = arith.constant 1 : index
    %1 = memref.load %arg1[%c1] : memref<4xf32, #tpu.memory_space<smem>>
    %c2 = arith.constant 2 : index
    %2 = memref.load %arg1[%c2] : memref<4xf32, #tpu.memory_space<smem>>
    %c3 = arith.constant 3 : index
    %3 = memref.load %arg1[%c3] : memref<4xf32, #tpu.memory_space<smem>>
    %c0_0 = arith.constant 0 : index
    %c0_1 = arith.constant 0 : index
    %4 = vector.load %arg2[%c0_0, %c0_1] : memref<3x128xf32, #tpu.memory_space<vmem>>, vector<1x128xf32>
    %5 = vector.broadcast %0 : f32 to vector<1x128xf32>
    %6 = arith.mulf %5, %4 : vector<1x128xf32>
    %c1_2 = arith.constant 1 : index
    %c0_3 = arith.constant 0 : index
    %7 = vector.load %arg2[%c1_2, %c0_3] : memref<3x128xf32, #tpu.memory_space<vmem>>, vector<1x128xf32>
    %8 = vector.broadcast %1 : f32 to vector<1x128xf32>
    %9 = arith.mulf %8, %7 : vector<1x128xf32>
    %10 = arith.addf %6, %9 : vector<1x128xf32>
    %c2_4 = arith.constant 2 : index
    %c0_5 = arith.constant 0 : index
    %11 = vector.load %arg2[%c2_4, %c0_5] : memref<3x128xf32, #tpu.memory_space<vmem>>, vector<1x128xf32>
    %12 = vector.broadcast %2 : f32 to vector<1x128xf32>
    %13 = arith.mulf %12, %11 : vector<1x128xf32>
    %14 = arith.addf %10, %13 : vector<1x128xf32>
    %15 = vector.broadcast %3 : f32 to vector<1x128xf32>
    %16 = arith.addf %14, %15 : vector<1x128xf32>
    %c0_6 = arith.constant 0 : index
    %c0_7 = arith.constant 0 : index
    %17 = vector.load %arg3[%c0_6, %c0_7] : memref<1x128xf32, #tpu.memory_space<vmem>>, vector<1x128xf32>
    tpu.vector_store %arg3[%c0_6, %c0_7], %16 {strides = array<i32>} : memref<1x128xf32, #tpu.memory_space<vmem>>, vector<1x128xf32>,
    return
  }
  func.func @transform_0(%arg0: i32) -> i32 {
    %c0_i32 = arith.constant 0 : i32
    %c0_i32_0 = arith.constant 0 : i32
    return %c0_i32 : i32
  }
  func.func @transform_1(%arg0: i32) -> (i32, i32) {
    %c0_i32 = arith.constant 0 : i32
    %c0_i32_0 = arith.constant 0 : i32
    return %c0_i32, %arg0 : i32, i32
  }
  func.func @transform_2(%arg0: i32) -> (i32, i32) {
    %c0_i32 = arith.constant 0 : i32
    %c0_i32_0 = arith.constant 0 : i32
    return %c0_i32, %arg0 : i32, i32
  }
}

</mosaic_0001>

<llo_original>
// kernel: tpu_custom_call.1
$region0: #{tpu_custom_call.1}
  #allocation0 [shape = 'u32[]', space=smem, size = 0x4, offset = 0x4, fixed_abs, tag = 'smem constant byte address 0x4 - core index']
  #allocation1 [shape = 'u32[144,128]{1,0:T(1,128)}', space=vmem, size = 0x12000, scoped, tag = 'internal scratch']
  %s0 = inlined_call_operand.hbm [shape: f32[4], index: 0, kind: input, shape index: {}]
  %s1 = inlined_call_operand.hbm [shape: f32[3,8], index: 1, kind: input, shape index: {}]
  %s2 = inlined_call_operand.hbm [shape: f32[1,8], index: 2, kind: output, shape index: {}]
  %s3 = sld [smem:[#allocation0]]
  $region26: #{tpu_custom_call.1} parent=0
    _
  %s5 = ssub.s32 1, %s3
  %s6 = scalar_select 0, %s5, %s3
  $region1: #{tpu_custom_call.1} parent=0
    #allocation2 [shape = 'u8[512]{0}', space=smem, size = 0x200, scoped, tag = 'input window, operand 0, single buffered']
    #allocation3 [shape = 's32[1]{0}', space=sflag, size = 0x4, scoped, tag = 'scoped memory for tpu_custom_call.1']
    #allocation4 [shape = 's32[1]{0}', space=sflag, size = 0x4, scoped, tag = 'scoped memory for tpu_custom_call.1']
    #allocation5 [shape = 's32[1]{0}', space=sflag, size = 0x4, scoped, tag = 'scoped memory for tpu_custom_call.1']
    #allocation6 [shape = 'u8[2048]{0}', space=vmem, size = 0x800, scoped, tag = 'input window, operand 1, single buffered']
    #allocation7 [shape = 'u8[512]{0}', space=vmem, size = 0x400, scoped, tag = 'output window, operand 0, single buffered']
    %7 = vsyncpa [#allocation5], 0
    %8 = vsyncpa [#allocation3], 0
    %9 = vsyncpa [#allocation4], 0
    // Predicated region
    $region2: #{tpu_custom_call.1} parent=1 // pred_check
      _
    $region3: #{tpu_custom_call.1} parent=1 // pred_check_branch
      %11 = sbr.rel (0) target = $region5
    $region4: #{tpu_custom_call.1} parent=1 // pred_region
      %s13 = ssub.s32 16, 16
      %14 = vsyncadd [#allocation5], %s13
      %17 = dma.hbm_to_smem %s0, 16, [#allocation2], [#allocation5]
    $region5: #{tpu_custom_call.1} parent=1 // pred_fallthru
      _
    // Predicated region
    $region6: #{tpu_custom_call.1} parent=1 // pred_check
      _
    $region7: #{tpu_custom_call.1} parent=1 // pred_check_branch
      %19 = sbr.rel (0) target = $region9
    $region8: #{tpu_custom_call.1} parent=1 // pred_region
      %s21 = ssub.s32 64, 64
      %22 = vsyncadd [#allocation3], %s21
      %s24 = sshll.u32 [#allocation6], 4
      %s25 = int_to_ptr.vmem [resolvable:$true] %s24
      %27 = dma.hbm_to_vmem [thread:$0]  %s1, 64, %s25, [#allocation3]
    $region9: #{tpu_custom_call.1} parent=1 // pred_fallthru
      _
    // Predicated region
    $region10: #{tpu_custom_call.1} parent=1 // pred_check
      _
    $region11: #{tpu_custom_call.1} parent=1 // pred_check_branch
      %29 = sbr.rel (0) target = $region13
    $region12: #{tpu_custom_call.1} parent=1 // pred_region
      %30 = dma.done [#allocation5], 16
    $region13: #{tpu_custom_call.1} parent=1 // pred_fallthru
      _
    // Predicated region
    $region14: #{tpu_custom_call.1} parent=1 // pred_check
      _
    $region15: #{tpu_custom_call.1} parent=1 // pred_check_branch
      %32 = sbr.rel (0) target = $region17
    $region16: #{tpu_custom_call.1} parent=1 // pred_region
      %33 = dma.done [#allocation3], 64
    $region17: #{tpu_custom_call.1} parent=1 // pred_fallthru
      _
    %34 = sfence
    %s35 = sld [smem:[#allocation2]]
    %s36 = sld [smem:[#allocation2 + $0x1]]
    %s37 = sld [smem:[#allocation2 + $0x2]]
    %s38 = sld [smem:[#allocation2 + $0x3]]
    %v39 = vld [vmem:[#allocation6] sm:$0x1]
    %v40 = vstv %s35
    %v41 = vmul.f32 %v40, %v39
    %v42 = vld [vmem:[#allocation6 + $0x1] sm:$0x1]
    %v43 = vstv %s36
    %v44 = vmul.f32 %v43, %v42
    %v45 = vadd.f32 %v41, %v44
    %v46 = vld [vmem:[#allocation6 + $0x2] sm:$0x1]
    %v47 = vstv %s37
    %v48 = vmul.f32 %v47, %v46
    %v49 = vadd.f32 %v45, %v48
    %v50 = vstv %s38
    %v51 = vadd.f32 %v49, %v50
    %52 = vst [vmem:[#allocation7] sm:$0x1] %v51
    // Predicated region
    $region18: #{tpu_custom_call.1} parent=1 // pred_check
      _
    $region19: #{tpu_custom_call.1} parent=1 // pred_check_branch
      %54 = sbr.rel (0) target = $region21
    $region20: #{tpu_custom_call.1} parent=1 // pred_region
      %s56 = ssub.s32 16, 16
      %57 = vsyncadd [#allocation4], %s56
      %s59 = sshll.u32 [#allocation7], 4
      %s60 = int_to_ptr.vmem [resolvable:$true] %s59
      %62 = dma.vmem_to_hbm [thread:$0]  %s60, 16, %s2, [#allocation4]
    $region21: #{tpu_custom_call.1} parent=1 // pred_fallthru
      _
    // Predicated region
    $region22: #{tpu_custom_call.1} parent=1 // pred_check
      _
    $region23: #{tpu_custom_call.1} parent=1 // pred_check_branch
      %64 = sbr.rel (0) target = $region25
    $region24: #{tpu_custom_call.1} parent=1 // pred_region
      %65 = dma.done [#allocation4], 16
    $region25: #{tpu_custom_call.1} parent=1 // pred_fallthru
      _
    %66 = vsyncpa [#allocation3], 1
    %67 = vsyncpa [#allocation4], 1
    %68 = vsyncpa [#allocation5], 1

</llo_original>
